<compile_context>
chip_gen: v7x
topology: tpu7x:2x2x1
jax: 0.10.0
libtpu: 0.0.40
codegen_flags: <defaults>
</compile_context>

<pallas_src>
import jax
import jax.numpy as jnp
from jax.experimental import pallas as pl
from jax.experimental.pallas import tpu as pltpu

HIDDEN = 256
HEAD_PAD = 128             # lane padding per head (mean / log_std)
N_OUT = 2 * HEAD_PAD       # fused, lane-dense head output width


def _round_up(v, m):
    return (v + m - 1) // m * m


def actor_kernel(x_ref, w1_ref, b1_ref, w2_ref, b2_ref, wh_ref, bh_ref, out_ref):
    # x / weights are bf16; accumulate in f32 on the MXU; elementwise stays f32.
    x = x_ref[...]                                                        # (TB, Dp) bf16
    h1 = jnp.dot(x, w1_ref[...], preferred_element_type=jnp.float32)     # (TB, 256) f32
    h1 = jnp.maximum(h1 + b1_ref[...], 0.0)

    h2 = jnp.dot(h1.astype(jnp.bfloat16), w2_ref[...],
                 preferred_element_type=jnp.float32)                     # (TB, 256) f32
    h2 = jnp.maximum(h2 + b2_ref[...], 0.0)

    y = jnp.dot(h2.astype(jnp.bfloat16), wh_ref[...],
                preferred_element_type=jnp.float32) + bh_ref[...]        # (TB, 256) f32

    # columns [0,128) = mean, columns [128,256) = log_std -> exp only the std half.
    col = jax.lax.broadcasted_iota(jnp.int32, y.shape, 1)
    out_ref[...] = jnp.where(col >= HEAD_PAD, jnp.exp(y), y)


def actor_forward(x, params, tb=128):
    """Returns (mean, std) of the Gaussian policy, shapes (B, n_actions)."""
    x = jnp.asarray(x, jnp.float32)
    B, D = x.shape
    A = params["wm"].shape[1]
    assert A <= HEAD_PAD, "n_actions must fit in one 128-lane head slot"

    D_pad = _round_up(max(D, 1), 128)
    B_pad = _round_up(max(B, 1), tb)

    # --- pad / fuse / cast parameters for the kernel (tiny, jit-foldable ops) ---
    x_p = jnp.zeros((B_pad, D_pad), jnp.float32).at[:B, :D].set(x).astype(jnp.bfloat16)

    w1 = jnp.zeros((D_pad, HIDDEN), jnp.float32).at[:D, :].set(params["w1"])
    w1 = w1.astype(jnp.bfloat16)
    w2 = params["w2"].astype(jnp.bfloat16)

    wh = jnp.zeros((HIDDEN, N_OUT), jnp.float32)
    wh = wh.at[:, :A].set(params["wm"]).at[:, HEAD_PAD:HEAD_PAD + A].set(params["ws"])
    wh = wh.astype(jnp.bfloat16)

    b1 = params["b1"].reshape(1, HIDDEN).astype(jnp.float32)
    b2 = params["b2"].reshape(1, HIDDEN).astype(jnp.float32)
    bh = jnp.zeros((1, N_OUT), jnp.float32)
    bh = bh.at[0, :A].set(params["bm"]).at[0, HEAD_PAD:HEAD_PAD + A].set(params["bs"])

    const = lambda i: (0, 0)   # weights/biases: same block every grid step (stay resident)
    out = pl.pallas_call(
        actor_kernel,
        out_shape=jax.ShapeDtypeStruct((B_pad, N_OUT), jnp.float32),
        grid=(B_pad // tb,),
        in_specs=[
            pl.BlockSpec((tb, D_pad), lambda i: (i, 0)),      # x tiles over batch
            pl.BlockSpec((D_pad, HIDDEN), const),             # W1
            pl.BlockSpec((1, HIDDEN), const),                 # b1
            pl.BlockSpec((HIDDEN, HIDDEN), const),            # W2
            pl.BlockSpec((1, HIDDEN), const),                 # b2
            pl.BlockSpec((HIDDEN, N_OUT), const),             # fused head W [mean|log_std]
            pl.BlockSpec((1, N_OUT), const),                  # fused head bias
        ],
        out_specs=pl.BlockSpec((tb, N_OUT), lambda i: (i, 0)),
        compiler_params=pltpu.CompilerParams(
            dimension_semantics=("parallel",)),                # lets v7x shard over 2 TCs
    )(x_p, w1, b1, w2, b2, wh, bh)

    mean = out[:B, :A]
    std = out[:B, HEAD_PAD:HEAD_PAD + A]
    return mean, std


def xavier_uniform(key, fan_in, fan_out):
    # matches torch.nn.init.xavier_uniform_ bound; stored transposed (in, out)
    bound = jnp.sqrt(6.0 / (fan_in + fan_out))
    return jax.random.uniform(key, (fan_in, fan_out), jnp.float32, -bound, bound)


def init_params(key, input_dims, n_actions):
    k1, k2, k3, k4 = jax.random.split(key, 4)
    return {
        "w1": xavier_uniform(k1, input_dims, HIDDEN),
        "b1": jnp.full((HIDDEN,), 0.01, jnp.float32),
        "w2": xavier_uniform(k2, HIDDEN, HIDDEN),
        "b2": jnp.full((HIDDEN,), 0.01, jnp.float32),
        "wm": xavier_uniform(k3, HIDDEN, n_actions),
        "bm": jnp.full((n_actions,), 0.01, jnp.float32),
        "ws": xavier_uniform(k4, HIDDEN, n_actions),
        "bs": jnp.full((n_actions,), 0.01, jnp.float32),
    }


def reference_forward(x, p):
    # Same numerics as the kernel: bf16 matmul operands, f32 accumulation,
    # f32 elementwise (bias / relu / exp).
    def mm(a, w):
        return jnp.dot(a.astype(jnp.bfloat16), w.astype(jnp.bfloat16),
                       preferred_element_type=jnp.float32)
    h1 = jnp.maximum(mm(x, p["w1"]) + p["b1"], 0.0)
    h2 = jnp.maximum(mm(h1, p["w2"]) + p["b2"], 0.0)
    mean = mm(h2, p["wm"]) + p["bm"]
    std = jnp.exp(mm(h2, p["ws"]) + p["bs"])
    return mean, std


if __name__ == "__main__":
    key = jax.random.PRNGKey(0)
    k_x, k_p, k_x2 = jax.random.split(key, 3)

    batch = 2
    input_dims = 16
    n_actions = 4

    x = jax.random.normal(k_x, (batch, input_dims), jnp.float32)
    params = init_params(k_p, input_dims, n_actions)

    fwd = jax.jit(actor_forward)

    # small-batch check (single grid step, batch padded to 128)
    mean, std = fwd(x, params)
    jax.block_until_ready((mean, std))
    ref_mean, ref_std = reference_forward(x, params)
    assert mean.shape == (batch, n_actions) and std.shape == (batch, n_actions)
    assert jnp.allclose(mean, ref_mean, atol=1e-3, rtol=1e-3)
    assert jnp.allclose(std, ref_std, atol=1e-3, rtol=1e-3)

    # larger, non-multiple batch to exercise the batch grid + padding path
    x2 = jax.random.normal(k_x2, (300, input_dims), jnp.float32)
    mean2, std2 = fwd(x2, params)
    jax.block_until_ready((mean2, std2))
    ref_mean2, ref_std2 = reference_forward(x2, params)
    assert jnp.allclose(mean2, ref_mean2, atol=1e-3, rtol=1e-3)
    assert jnp.allclose(std2, ref_std2, atol=1e-3, rtol=1e-3)

    print("KERNEL_OK")
</pallas_src>

<mosaic_0001>
module attributes {stable_mosaic.version = 11 : i64} {
  func.func @actor_kernel(%arg0: i32, %arg1: memref<128x128xbf16, #tpu.memory_space<vmem>>, %arg2: memref<128x256xbf16, #tpu.memory_space<vmem>>, %arg3: memref<1x256xf32, #tpu.memory_space<vmem>>, %arg4: memref<256x256xbf16, #tpu.memory_space<vmem>>, %arg5: memref<1x256xf32, #tpu.memory_space<vmem>>, %arg6: memref<256x256xbf16, #tpu.memory_space<vmem>>, %arg7: memref<1x256xf32, #tpu.memory_space<vmem>>, %arg8: memref<128x256xf32, #tpu.memory_space<vmem>>) attributes {dimension_semantics = [#tpu.dimension_semantics<parallel>], iteration_bounds = array<i64: 1>, scalar_prefetch = 0 : i64, scratch_operands = 0 : i64, tpu.core_type = #tpu.core_type<tc>, window_params = [{transform_indices = @transform_0, window_bounds = array<i64: 128, 128>}, {pipeline_mode = #tpu.pipeline_mode<synchronous>, transform_indices = @transform_1, window_bounds = array<i64: 128, 256>}, {pipeline_mode = #tpu.pipeline_mode<synchronous>, transform_indices = @transform_2, window_bounds = array<i64: 1, 256>}, {pipeline_mode = #tpu.pipeline_mode<synchronous>, transform_indices = @transform_3, window_bounds = array<i64: 256, 256>}, {pipeline_mode = #tpu.pipeline_mode<synchronous>, transform_indices = @transform_4, window_bounds = array<i64: 1, 256>}, {pipeline_mode = #tpu.pipeline_mode<synchronous>, transform_indices = @transform_5, window_bounds = array<i64: 256, 256>}, {pipeline_mode = #tpu.pipeline_mode<synchronous>, transform_indices = @transform_6, window_bounds = array<i64: 1, 256>}, {transform_indices = @transform_7, window_bounds = array<i64: 128, 256>}]} {
    %c0 = arith.constant 0 : index
    %c0_0 = arith.constant 0 : index
    %0 = vector.load %arg1[%c0, %c0_0] : memref<128x128xbf16, #tpu.memory_space<vmem>>, vector<128x128xbf16>
    %c0_1 = arith.constant 0 : index
    %c0_2 = arith.constant 0 : index
    %1 = vector.load %arg2[%c0_1, %c0_2] : memref<128x256xbf16, #tpu.memory_space<vmem>>, vector<128x256xbf16>
    %cst = arith.constant dense<0.000000e+00> : vector<128x256xf32>
    %2 = tpu.matmul %0, %1, %cst {dimension_numbers = #tpu.dot_dimension_numbers<[1], [0], [0], [1], [0, 0, 1, 1], [], []>} : vector<128x128xbf16>, vector<128x256xbf16>, vector<128x256xf32> -> vector<128x256xf32>
    %c0_3 = arith.constant 0 : index
    %c0_4 = arith.constant 0 : index
    %3 = vector.load %arg3[%c0_3, %c0_4] : memref<1x256xf32, #tpu.memory_space<vmem>>, vector<1x256xf32>
    %4 = vector.broadcast %3 : vector<1x256xf32> to vector<128x256xf32>
    %5 = arith.addf %2, %4 : vector<128x256xf32>
    %cst_5 = arith.constant 0.000000e+00 : f32
    %6 = vector.broadcast %cst_5 : f32 to vector<128x256xf32>
    %7 = arith.maximumf %5, %6 : vector<128x256xf32>
    %8 = arith.truncf %7 : vector<128x256xf32> to vector<128x256xbf16>
    %c0_6 = arith.constant 0 : index
    %c0_7 = arith.constant 0 : index
    %9 = vector.load %arg4[%c0_6, %c0_7] : memref<256x256xbf16, #tpu.memory_space<vmem>>, vector<256x256xbf16>
    %cst_8 = arith.constant dense<0.000000e+00> : vector<128x256xf32>
    %10 = tpu.matmul %8, %9, %cst_8 {dimension_numbers = #tpu.dot_dimension_numbers<[1], [0], [0], [1], [0, 0, 1, 1], [], []>} : vector<128x256xbf16>, vector<256x256xbf16>, vector<128x256xf32> -> vector<128x256xf32>
    %c0_9 = arith.constant 0 : index
    %c0_10 = arith.constant 0 : index
    %11 = vector.load %arg5[%c0_9, %c0_10] : memref<1x256xf32, #tpu.memory_space<vmem>>, vector<1x256xf32>
    %12 = vector.broadcast %11 : vector<1x256xf32> to vector<128x256xf32>
    %13 = arith.addf %10, %12 : vector<128x256xf32>
    %cst_11 = arith.constant 0.000000e+00 : f32
    %14 = vector.broadcast %cst_11 : f32 to vector<128x256xf32>
    %15 = arith.maximumf %13, %14 : vector<128x256xf32>
    %16 = arith.truncf %15 : vector<128x256xf32> to vector<128x256xbf16>
    %c0_12 = arith.constant 0 : index
    %c0_13 = arith.constant 0 : index
    %17 = vector.load %arg6[%c0_12, %c0_13] : memref<256x256xbf16, #tpu.memory_space<vmem>>, vector<256x256xbf16>
    %cst_14 = arith.constant dense<0.000000e+00> : vector<128x256xf32>
    %18 = tpu.matmul %16, %17, %cst_14 {dimension_numbers = #tpu.dot_dimension_numbers<[1], [0], [0], [1], [0, 0, 1, 1], [], []>} : vector<128x256xbf16>, vector<256x256xbf16>, vector<128x256xf32> -> vector<128x256xf32>
    %c0_15 = arith.constant 0 : index
    %c0_16 = arith.constant 0 : index
    %19 = vector.load %arg7[%c0_15, %c0_16] : memref<1x256xf32, #tpu.memory_space<vmem>>, vector<1x256xf32>
    %20 = vector.broadcast %19 : vector<1x256xf32> to vector<128x256xf32>
    %21 = arith.addf %18, %20 : vector<128x256xf32>
    %22 = tpu.iota {dimensions = array<i32: 1>} : vector<128x256xi32>
    %c128_i32 = arith.constant 128 : i32
    %23 = vector.broadcast %c128_i32 : i32 to vector<128x256xi32>
    %24 = arith.cmpi sge, %22, %23 : vector<128x256xi32>
    %25 = math.exp %21 : vector<128x256xf32>
    %26 = arith.select %24, %25, %21 : vector<128x256xi1>, vector<128x256xf32>
    %c0_17 = arith.constant 0 : index
    %c0_18 = arith.constant 0 : index
    %27 = vector.load %arg8[%c0_17, %c0_18] : memref<128x256xf32, #tpu.memory_space<vmem>>, vector<128x256xf32>
    tpu.vector_store %arg8[%c0_17, %c0_18], %26 {strides = array<i32>} : memref<128x256xf32, #tpu.memory_space<vmem>>, vector<128x256xf32>,
    return
  }
  func.func @transform_0(%arg0: i32) -> (i32, i32) {
    %c0_i32 = arith.constant 0 : i32
    %c0_i32_0 = arith.constant 0 : i32
    return %arg0, %c0_i32 : i32, i32
  }
  func.func @transform_1(%arg0: i32) -> (i32, i32) {
    %c0_i32 = arith.constant 0 : i32
    %c0_i32_0 = arith.constant 0 : i32
    %c0_i32_1 = arith.constant 0 : i32
    return %c0_i32, %c0_i32_0 : i32, i32
  }
  func.func @transform_2(%arg0: i32) -> (i32, i32) {
    %c0_i32 = arith.constant 0 : i32
    %c0_i32_0 = arith.constant 0 : i32
    %c0_i32_1 = arith.constant 0 : i32
    return %c0_i32, %c0_i32_0 : i32, i32
  }
  func.func @transform_3(%arg0: i32) -> (i32, i32) {
    %c0_i32 = arith.constant 0 : i32
    %c0_i32_0 = arith.constant 0 : i32
    %c0_i32_1 = arith.constant 0 : i32
    return %c0_i32, %c0_i32_0 : i32, i32
  }
  func.func @transform_4(%arg0: i32) -> (i32, i32) {
    %c0_i32 = arith.constant 0 : i32
    %c0_i32_0 = arith.constant 0 : i32
    %c0_i32_1 = arith.constant 0 : i32
    return %c0_i32, %c0_i32_0 : i32, i32
  }
  func.func @transform_5(%arg0: i32) -> (i32, i32) {
    %c0_i32 = arith.constant 0 : i32
    %c0_i32_0 = arith.constant 0 : i32
    %c0_i32_1 = arith.constant 0 : i32
    return %c0_i32, %c0_i32_0 : i32, i32
  }
  func.func @transform_6(%arg0: i32) -> (i32, i32) {
    %c0_i32 = arith.constant 0 : i32
    %c0_i32_0 = arith.constant 0 : i32
    %c0_i32_1 = arith.constant 0 : i32
    return %c0_i32, %c0_i32_0 : i32, i32
  }
  func.func @transform_7(%arg0: i32) -> (i32, i32) {
    %c0_i32 = arith.constant 0 : i32
    %c0_i32_0 = arith.constant 0 : i32
    return %arg0, %c0_i32 : i32, i32
  }
}

</mosaic_0001>

<llo_original>
// kernel: actor_forward.1
$region0: #{actor_forward.1}
  #allocation0 [shape = 'u32[]', space=smem, size = 0x4, offset = 0x4, fixed_abs, tag = 'smem constant byte address 0x4 - core index']
  #allocation1 [shape = 'u32[144,128]{1,0:T(1,128)}', space=vmem, size = 0x12000, scoped, tag = 'internal scratch']
  %s0 = inlined_call_operand.vmem [shape: bf16[128,128], index: 0, kind: input, shape index: {}]
  %s1 = inlined_call_operand.vmem [shape: bf16[128,256], index: 1, kind: input, shape index: {}]
  %s2 = inlined_call_operand.vmem [shape: f32[1,256], index: 2, kind: input, shape index: {}]
  %s3 = inlined_call_operand.vmem [shape: bf16[256,256], index: 3, kind: input, shape index: {}]
  %s4 = inlined_call_operand.vmem [shape: f32[1,256], index: 4, kind: input, shape index: {}]
  %s5 = inlined_call_operand.vmem [shape: bf16[256,256], index: 5, kind: input, shape index: {}]
  %s6 = inlined_call_operand.vmem [shape: f32[1,256], index: 6, kind: input, shape index: {}]
  %s7 = inlined_call_operand.vmem [shape: f32[128,256], index: 7, kind: output, shape index: {}]
  %s8 = sld [smem:[#allocation0]]
  $region38: #{actor_forward.1} parent=0
    _
  %s10 = ssub.s32 1, %s8
  %s11 = scalar_select 0, %s10, %s8
  // Predicated region
  $region2: #{actor_forward.1} parent=0 // pred_check
    _
  $region3: #{actor_forward.1} parent=0 // pred_check_branch
    %13 = sbr.rel (0) target = $region5
  $region4: #{actor_forward.1} parent=0 // pred_region
    _
  $region5: #{actor_forward.1} parent=0 // pred_fallthru
    _
  // Predicated region
  $region6: #{actor_forward.1} parent=0 // pred_check
    _
  $region7: #{actor_forward.1} parent=0 // pred_check_branch
    %15 = sbr.rel (0) target = $region9
  $region8: #{actor_forward.1} parent=0 // pred_region
    _
  $region9: #{actor_forward.1} parent=0 // pred_fallthru
    _
  // Predicated region
  $region10: #{actor_forward.1} parent=0 // pred_check
    _
  $region11: #{actor_forward.1} parent=0 // pred_check_branch
    %17 = sbr.rel (0) target = $region13
  $region12: #{actor_forward.1} parent=0 // pred_region
    _
  $region13: #{actor_forward.1} parent=0 // pred_fallthru
    _
  // Predicated region
  $region14: #{actor_forward.1} parent=0 // pred_check
    _
  $region15: #{actor_forward.1} parent=0 // pred_check_branch
    %19 = sbr.rel (0) target = $region17
  $region16: #{actor_forward.1} parent=0 // pred_region
    _
  $region17: #{actor_forward.1} parent=0 // pred_fallthru
    _
  // Predicated region
  $region18: #{actor_forward.1} parent=0 // pred_check
    _
  $region19: #{actor_forward.1} parent=0 // pred_check_branch
    %21 = sbr.rel (0) target = $region21
  $region20: #{actor_forward.1} parent=0 // pred_region
    _
  $region21: #{actor_forward.1} parent=0 // pred_fallthru
    _
  // Predicated region
  $region22: #{actor_forward.1} parent=0 // pred_check
    _
  $region23: #{actor_forward.1} parent=0 // pred_check_branch
    %23 = sbr.rel (0) target = $region25
  $region24: #{actor_forward.1} parent=0 // pred_region
    _
  $region25: #{actor_forward.1} parent=0 // pred_fallthru
    _
  // Predicated region
  $region26: #{actor_forward.1} parent=0 // pred_check
    _
  $region27: #{actor_forward.1} parent=0 // pred_check_branch
    %25 = sbr.rel (0) target = $region29
  $region28: #{actor_forward.1} parent=0 // pred_region
    _
  $region29: #{actor_forward.1} parent=0 // pred_fallthru
    _
  %v27 = vld [vmem:[%s0] sm:$0xf]
  %v28 = vld [vmem:[%s0 + $0x4] sm:$0xf]
  %v29 = vld [vmem:[%s0 + $0x8] sm:$0xf]
  %v30 = vld [vmem:[%s0 + $0xc] sm:$0xf]
  %v31 = vld [vmem:[%s0 + $0x10] sm:$0xf]
  %v32 = vld [vmem:[%s0 + $0x14] sm:$0xf]
  %v33 = vld [vmem:[%s0 + $0x18] sm:$0xf]
  %v34 = vld [vmem:[%s0 + $0x1c] sm:$0xf]
  %v35 = vld [vmem:[%s0 + $0x20] sm:$0xf]
  %v36 = vld [vmem:[%s0 + $0x24] sm:$0xf]
  %v37 = vld [vmem:[%s0 + $0x28] sm:$0xf]
  %v38 = vld [vmem:[%s0 + $0x2c] sm:$0xf]
  %v39 = vld [vmem:[%s0 + $0x30] sm:$0xf]
  %v40 = vld [vmem:[%s0 + $0x34] sm:$0xf]
  %v41 = vld [vmem:[%s0 + $0x38] sm:$0xf]
  %v42 = vld [vmem:[%s0 + $0x3c] sm:$0xf]
  %v43 = vld [vmem:[%s1] sm:$0xff]
  %v44 = vld [vmem:[%s1 + $0x8] sm:$0xff]
  %v45 = vld [vmem:[%s1 + $0x10] sm:$0xff]
  %v46 = vld [vmem:[%s1 + $0x18] sm:$0xff]
  %v47 = vld [vmem:[%s1 + $0x20] sm:$0xff]
  %v48 = vld [vmem:[%s1 + $0x28] sm:$0xff]
  %v49 = vld [vmem:[%s1 + $0x30] sm:$0xff]
  %v50 = vld [vmem:[%s1 + $0x38] sm:$0xff]
  %v51 = vld [vmem:[%s1 + $0x40] sm:$0xff]
  %v52 = vld [vmem:[%s1 + $0x48] sm:$0xff]
  %v53 = vld [vmem:[%s1 + $0x50] sm:$0xff]
  %v54 = vld [vmem:[%s1 + $0x58] sm:$0xff]
  %v55 = vld [vmem:[%s1 + $0x60] sm:$0xff]
  %v56 = vld [vmem:[%s1 + $0x68] sm:$0xff]
  %v57 = vld [vmem:[%s1 + $0x70] sm:$0xff]
  %v58 = vld [vmem:[%s1 + $0x78] sm:$0xff]
  %v59 = vld [vmem:[%s2] sm:$0x3]
  %v61 = vlaneseq
  %v62 = vshrl.u32 %v61, 7
  %v63 = vsub.s32 0, %v62
  %v64 = vrot.slane %v59, %v63
  %v65 = vlaneseq
  %v66 = vshrl.u32 %v65, 7
  %v67 = vsub.s32 1, %v66
  %v68 = vrot.slane %v59, %v67
  %v87 = vunpack.c.l.b16 %v27
  %v88 = vunpack.c.l.b16 %v28
  %v89 = vunpack.c.l.b16 %v29
  %v90 = vunpack.c.l.b16 %v30
  %v91 = vunpack.c.l.b16 %v31
  %v92 = vunpack.c.l.b16 %v32
  %v93 = vunpack.c.l.b16 %v33
  %v94 = vunpack.c.l.b16 %v34
  %v95 = vunpack.c.l.b16 %v35
  %v96 = vunpack.c.l.b16 %v36
  %v97 = vunpack.c.l.b16 %v37
  %v98 = vunpack.c.l.b16 %v38
  %v99 = vunpack.c.l.b16 %v39
  %v100 = vunpack.c.l.b16 %v40
  %v101 = vunpack.c.l.b16 %v41
  %v102 = vunpack.c.l.b16 %v42
  %v103 = vpack.c.b16 %v88, %v87
  %v104 = vpack.c.b16 %v90, %v89
  %v105 = vpack.c.b16 %v92, %v91
  %v106 = vpack.c.b16 %v94, %v93
  %v107 = vpack.c.b16 %v96, %v95
  %v108 = vpack.c.b16 %v98, %v97
  %v109 = vpack.c.b16 %v100, %v99
  %v110 = vpack.c.b16 %v102, %v101
  %v135 = vunpack.c.l.b16 %v43
  %v136 = vunpack.c.h.b16 %v43
  %v137 = vunpack.c.l.b16 %v44
  %v138 = vunpack.c.h.b16 %v44
  %v139 = vunpack.c.l.b16 %v45
  %v140 = vunpack.c.h.b16 %v45
  %v141 = vunpack.c.l.b16 %v46
  %v142 = vunpack.c.h.b16 %v46
  %v143 = vunpack.c.l.b16 %v47
  %v144 = vunpack.c.h.b16 %v47
  %v145 = vunpack.c.l.b16 %v48
  %v146 = vunpack.c.h.b16 %v48
  %v147 = vunpack.c.l.b16 %v49
  %v148 = vunpack.c.h.b16 %v49
  %v149 = vunpack.c.l.b16 %v50
  %v150 = vunpack.c.h.b16 %v50
  %v151 = vunpack.c.l.b16 %v51
  %v152 = vunpack.c.h.b16 %v51
  %v153 = vunpack.c.l.b16 %v52
  %v154 = vunpack.c.h.b16 %v52
  %v155 = vunpack.c.l.b16 %v53
  %v156 = vunpack.c.h.b16 %v53
  %v157 = vunpack.c.l.b16 %v54
  %v158 = vunpack.c.h.b16 %v54
  %v159 = vunpack.c.l.b16 %v55
  %v160 = vunpack.c.h.b16 %v55
  %v161 = vunpack.c.l.b16 %v56
  %v162 = vunpack.c.h.b16 %v56
  %v163 = vunpack.c.l.b16 %v57
  %v164 = vunpack.c.h.b16 %v57
  %v165 = vunpack.c.l.b16 %v58
  %v166 = vunpack.c.h.b16 %v58
  %v167 = vpack.c.b16 %v137, %v135
  %v168 = vpack.c.b16 %v138, %v136
  %v169 = vpack.c.b16 %v141, %v139
  %v170 = vpack.c.b16 %v142, %v140
  %v171 = vpack.c.b16 %v145, %v143
  %v172 = vpack.c.b16 %v146, %v144
  %v173 = vpack.c.b16 %v149, %v147
  %v174 = vpack.c.b16 %v150, %v148
  %v175 = vpack.c.b16 %v153, %v151
  %v176 = vpack.c.b16 %v154, %v152
  %v177 = vpack.c.b16 %v157, %v155
  %v178 = vpack.c.b16 %v158, %v156
  %v179 = vpack.c.b16 %v161, %v159
  %v180 = vpack.c.b16 %v162, %v160
  %v181 = vpack.c.b16 %v165, %v163
  %v182 = vpack.c.b16 %v166, %v164
  %199 = vmatprep.subr.bf16.mxu0 %v168
  %200 = vmatpush1.bf16.msra.mxu0 %v167
  %201 = vmatprep.subr.bf16.mxu0 %v170
  %202 = vmatpush1.bf16.msra.mxu0 %v169
  %203 = vmatprep.subr.bf16.mxu0 %v172
  %204 = vmatpush1.bf16.msra.mxu0 %v171
  %205 = vmatprep.subr.bf16.mxu0 %v174
  %206 = vmatpush1.bf16.msra.mxu0 %v173
  %207 = vmatprep.subr.bf16.mxu0 %v176
  %208 = vmatpush1.bf16.msra.mxu0 %v175
  %209 = vmatprep.subr.bf16.mxu0 %v178
  %210 = vmatpush1.bf16.msra.mxu0 %v177
  %211 = vmatprep.subr.bf16.mxu0 %v180
  %212 = vmatpush1.bf16.msra.mxu0 %v179
  %213 = vmatprep.subr.bf16.mxu0 %v182
  %214 = vmatpush1.bf16.msra.mxu0 %v181
  %215 = vmatprep.subr.bf16.mxu0 0
  %216 = vmatpush1.bf16.msra.mxu0 0
  %217 = vmatprep.subr.bf16.mxu0 0
  %218 = vmatpush1.bf16.msra.mxu0 0
  %219 = vmatprep.subr.bf16.mxu0 0
  %220 = vmatpush1.bf16.msra.mxu0 0
  %221 = vmatprep.subr.bf16.mxu0 0
  %222 = vmatpush1.bf16.msra.mxu0 0
  %223 = vmatprep.subr.bf16.mxu0 0
  %224 = vmatpush1.bf16.msra.mxu0 0
  %225 = vmatprep.subr.bf16.mxu0 0
  %226 = vmatpush1.bf16.msra.mxu0 0
  %227 = vmatprep.subr.bf16.mxu0 0
  %228 = vmatpush1.bf16.msra.mxu0 0
  %229 = vmatprep.subr.bf16.mxu0 0
  %230 = vmatpush1.bf16.msra.mxu0 0
  %231 = vmatprep.mubr.bf16.mxu0 0
  %232 = vmatmul.mubr.bf16.gmra.mrb[0].mxu0 %v103
  %v233 = vpop.f32.mrb[0].mxu0
  %v234 = vadd.f32 %v64, %v233
  %v235 = vpop.f32.mrb[0].mxu0
  %v236 = vadd.f32 %v68, %v235
  %v237 = vpop.f32.mrb[0].mxu0
  %v238 = vadd.f32 %v64, %v237
  %v239 = vpop.f32.mrb[0].mxu0
  %v240 = vadd.f32 %v68, %v239
  %241 = vmatprep.mubr.bf16.mxu0 0
  %242 = vmatmul.mubr.bf16.gmra.mrb[0].mxu0 %v104
  %v243 = vpop.f32.mrb[0].mxu0
  %v244 = vadd.f32 %v64, %v243
  %v245 = vpop.f32.mrb[0].mxu0
  %v246 = vadd.f32 %v68, %v245
  %v247 = vpop.f32.mrb[0].mxu0
  %v248 = vadd.f32 %v64, %v247
  %v249 = vpop.f32.mrb[0].mxu0
  %v250 = vadd.f32 %v68, %v249
  %251 = vmatprep.mubr.bf16.mxu0 0
  %252 = vmatmul.mubr.bf16.gmra.mrb[0].mxu0 %v105
  %v253 = vpop.f32.mrb[0].mxu0
  %v254 = vadd.f32 %v64, %v253
  %v255 = vpop.f32.mrb[0].mxu0
  %v256 = vadd.f32 %v68, %v255
  %v257 = vpop.f32.mrb[0].mxu0
  %v258 = vadd.f32 %v64, %v257
  %v259 = vpop.f32.mrb[0].mxu0
  %v260 = vadd.f32 %v68, %v259
  %261 = vmatprep.mubr.bf16.mxu0 0
  %262 = vmatmul.mubr.bf16.gmra.mrb[0].mxu0 %v106
  %v263 = vpop.f32.mrb[0].mxu0
  %v264 = vadd.f32 %v64, %v263
  %v265 = vpop.f32.mrb[0].mxu0
  %v266 = vadd.f32 %v68, %v265
  %v267 = vpop.f32.mrb[0].mxu0
  %v268 = vadd.f32 %v64, %v267
  %v269 = vpop.f32.mrb[0].mxu0
  %v270 = vadd.f32 %v68, %v269
  %271 = vmatprep.mubr.bf16.mxu0 0
  %272 = vmatmul.mubr.bf16.gmra.mrb[0].mxu0 %v107
  %v273 = vpop.f32.mrb[0].mxu0
  %v274 = vadd.f32 %v64, %v273
  %v275 = vpop.f32.mrb[0].mxu0
  %v276 = vadd.f32 %v68, %v275
  %v277 = vpop.f32.mrb[0].mxu0
  %v278 = vadd.f32 %v64, %v277
  %v279 = vpop.f32.mrb[0].mxu0
  %v280 = vadd.f32 %v68, %v279
  %281 = vmatprep.mubr.bf16.mxu0 0
  %282 = vmatmul.mubr.bf16.gmra.mrb[0].mxu0 %v108
  %v283 = vpop.f32.mrb[0].mxu0
  %v284 = vadd.f32 %v64, %v283
  %v285 = vpop.f32.mrb[0].mxu0
  %v286 = vadd.f32 %v68, %v285
  %v287 = vpop.f32.mrb[0].mxu0
  %v288 = vadd.f32 %v64, %v287
  %v289 = vpop.f32.mrb[0].mxu0
  %v290 = vadd.f32 %v68, %v289
  %291 = vmatprep.mubr.bf16.mxu0 0
  %292 = vmatmul.mubr.bf16.gmra.mrb[0].mxu0 %v109
  %v293 = vpop.f32.mrb[0].mxu0
  %v294 = vadd.f32 %v64, %v293
  %v295 = vpop.f32.mrb[0].mxu0
  %v296 = vadd.f32 %v68, %v295
  %v297 = vpop.f32.mrb[0].mxu0
  %v298 = vadd.f32 %v64, %v297
  %v299 = vpop.f32.mrb[0].mxu0
  %v300 = vadd.f32 %v68, %v299
  %301 = vmatprep.mubr.bf16.mxu0 0
  %302 = vmatmul.mubr.bf16.gmra.mrb[0].mxu0 %v110
  %v303 = vpop.f32.mrb[0].mxu0
  %v304 = vadd.f32 %v64, %v303
  %v305 = vpop.f32.mrb[0].mxu0
  %v306 = vadd.f32 %v68, %v305
  %v307 = vpop.f32.mrb[0].mxu0
  %v308 = vadd.f32 %v64, %v307
  %v309 = vpop.f32.mrb[0].mxu0
  %v310 = vadd.f32 %v68, %v309
  %311 = vdwg.mxu0
  %v312 = vmax.f32 %v234, 0.0
  %v313 = vmax.f32 %v236, 0.0
  %v314 = vmax.f32 %v238, 0.0
  %v315 = vmax.f32 %v240, 0.0
  %v316 = vmax.f32 %v244, 0.0
  %v317 = vmax.f32 %v246, 0.0
  %v318 = vmax.f32 %v248, 0.0
  %v319 = vmax.f32 %v250, 0.0
  %v320 = vmax.f32 %v254, 0.0
  %v321 = vmax.f32 %v256, 0.0
  %v322 = vmax.f32 %v258, 0.0
  %v323 = vmax.f32 %v260, 0.0
  %v324 = vmax.f32 %v264, 0.0
  %v325 = vmax.f32 %v266, 0.0
  %v326 = vmax.f32 %v268, 0.0
  %v327 = vmax.f32 %v270, 0.0
  %v328 = vmax.f32 %v274, 0.0
  %v329 = vmax.f32 %v276, 0.0
  %v330 = vmax.f32 %v278, 0.0
  %v331 = vmax.f32 %v280, 0.0
  %v332 = vmax.f32 %v284, 0.0
  %v333 = vmax.f32 %v286, 0.0
  %v334 = vmax.f32 %v288, 0.0
  %v335 = vmax.f32 %v290, 0.0
  %v336 = vmax.f32 %v294, 0.0
  %v337 = vmax.f32 %v296, 0.0
  %v338 = vmax.f32 %v298, 0.0
  %v339 = vmax.f32 %v300, 0.0
  %v340 = vmax.f32 %v304, 0.0
  %v341 = vmax.f32 %v306, 0.0
  %v342 = vmax.f32 %v308, 0.0
  %v343 = vmax.f32 %v310, 0.0
  %v344 = vpack.c.bf16 %v314, %v312
  %v345 = vpack.c.bf16 %v315, %v313
  %v346 = vpack.c.bf16 %v318, %v316
  %v347 = vpack.c.bf16 %v319, %v317
  %v348 = vpack.c.bf16 %v322, %v320
  %v349 = vpack.c.bf16 %v323, %v321
  %v350 = vpack.c.bf16 %v326, %v324
  %v351 = vpack.c.bf16 %v327, %v325
  %v352 = vpack.c.bf16 %v330, %v328
  %v353 = vpack.c.bf16 %v331, %v329
  %v354 = vpack.c.bf16 %v334, %v332
  %v355 = vpack.c.bf16 %v335, %v333
  %v356 = vpack.c.bf16 %v338, %v336
  %v357 = vpack.c.bf16 %v339, %v337
  %v358 = vpack.c.bf16 %v342, %v340
  %v359 = vpack.c.bf16 %v343, %v341
  %v360 = vld [vmem:[%s3] sm:$0xff]
  %v361 = vld [vmem:[%s3 + $0x8] sm:$0xff]
  %v362 = vld [vmem:[%s3 + $0x10] sm:$0xff]
  %v363 = vld [vmem:[%s3 + $0x18] sm:$0xff]
  %v364 = vld [vmem:[%s3 + $0x20] sm:$0xff]
  %v365 = vld [vmem:[%s3 + $0x28] sm:$0xff]
  %v366 = vld [vmem:[%s3 + $0x30] sm:$0xff]
  %v367 = vld [vmem:[%s3 + $0x38] sm:$0xff]
  %v368 = vld [vmem:[%s3 + $0x40] sm:$0xff]
  %v369 = vld [vmem:[%s3 + $0x48] sm:$0xff]
  %v370 = vld [vmem:[%s3 + $0x50] sm:$0xff]
  %v371 = vld [vmem:[%s3 + $0x58] sm:$0xff]
  %v372 = vld [vmem:[%s3 + $0x60] sm:$0xff]
  %v373 = vld [vmem:[%s3 + $0x68] sm:$0xff]
  %v374 = vld [vmem:[%s3 + $0x70] sm:$0xff]
  %v375 = vld [vmem:[%s3 + $0x78] sm:$0xff]
  %v376 = vld [vmem:[%s3 + $0x80] sm:$0xff]
  %v377 = vld [vmem:[%s3 + $0x88] sm:$0xff]
  %v378 = vld [vmem:[%s3 + $0x90] sm:$0xff]
  %v379 = vld [vmem:[%s3 + $0x98] sm:$0xff]
  %v380 = vld [vmem:[%s3 + $0xa0] sm:$0xff]
  %v381 = vld [vmem:[%s3 + $0xa8] sm:$0xff]
  %v382 = vld [vmem:[%s3 + $0xb0] sm:$0xff]
  %v383 = vld [vmem:[%s3 + $0xb8] sm:$0xff]
  %v384 = vld [vmem:[%s3 + $0xc0] sm:$0xff]
  %v385 = vld [vmem:[%s3 + $0xc8] sm:$0xff]
  %v386 = vld [vmem:[%s3 + $0xd0] sm:$0xff]
  %v387 = vld [vmem:[%s3 + $0xd8] sm:$0xff]
  %v388 = vld [vmem:[%s3 + $0xe0] sm:$0xff]
  %v389 = vld [vmem:[%s3 + $0xe8] sm:$0xff]
  %v390 = vld [vmem:[%s3 + $0xf0] sm:$0xff]
  %v391 = vld [vmem:[%s3 + $0xf8] sm:$0xff]
  %v392 = vld [vmem:[%s4] sm:$0x3]
  %v394 = vlaneseq
  %v395 = vshrl.u32 %v394, 7
  %v396 = vsub.s32 0, %v395
  %v397 = vrot.slane %v392, %v396
  %v398 = vlaneseq
  %v399 = vshrl.u32 %v398, 7
  %v400 = vsub.s32 1, %v399
  %v401 = vrot.slane %v392, %v400
  %v436 = vunpack.c.l.b16 %v360
  %v437 = vunpack.c.h.b16 %v360
  %v438 = vunpack.c.l.b16 %v361
  %v439 = vunpack.c.h.b16 %v361
  %v440 = vunpack.c.l.b16 %v362
  %v441 = vunpack.c.h.b16 %v362
  %v442 = vunpack.c.l.b16 %v363
  %v443 = vunpack.c.h.b16 %v363
  %v444 = vunpack.c.l.b16 %v364
  %v445 = vunpack.c.h.b16 %v364
  %v446 = vunpack.c.l.b16 %v365
  %v447 = vunpack.c.h.b16 %v365
  %v448 = vunpack.c.l.b16 %v366
  %v449 = vunpack.c.h.b16 %v366
  %v450 = vunpack.c.l.b16 %v367
  %v451 = vunpack.c.h.b16 %v367
  %v452 = vunpack.c.l.b16 %v368
  %v453 = vunpack.c.h.b16 %v368
  %v454 = vunpack.c.l.b16 %v369
  %v455 = vunpack.c.h.b16 %v369
  %v456 = vunpack.c.l.b16 %v370
  %v457 = vunpack.c.h.b16 %v370
  %v458 = vunpack.c.l.b16 %v371
  %v459 = vunpack.c.h.b16 %v371
  %v460 = vunpack.c.l.b16 %v372
  %v461 = vunpack.c.h.b16 %v372
  %v462 = vunpack.c.l.b16 %v373
  %v463 = vunpack.c.h.b16 %v373
  %v464 = vunpack.c.l.b16 %v374
  %v465 = vunpack.c.h.b16 %v374
  %v466 = vunpack.c.l.b16 %v375
  %v467 = vunpack.c.h.b16 %v375
  %v468 = vunpack.c.l.b16 %v376
  %v469 = vunpack.c.h.b16 %v376
  %v470 = vunpack.c.l.b16 %v377
  %v471 = vunpack.c.h.b16 %v377
  %v472 = vunpack.c.l.b16 %v378
  %v473 = vunpack.c.h.b16 %v378
  %v474 = vunpack.c.l.b16 %v379
  %v475 = vunpack.c.h.b16 %v379
  %v476 = vunpack.c.l.b16 %v380
  %v477 = vunpack.c.h.b16 %v380
  %v478 = vunpack.c.l.b16 %v381
  %v479 = vunpack.c.h.b16 %v381
  %v480 = vunpack.c.l.b16 %v382
  %v481 = vunpack.c.h.b16 %v382
  %v482 = vunpack.c.l.b16 %v383
  %v483 = vunpack.c.h.b16 %v383
  %v484 = vunpack.c.l.b16 %v384
  %v485 = vunpack.c.h.b16 %v384
  %v486 = vunpack.c.l.b16 %v385
  %v487 = vunpack.c.h.b16 %v385
  %v488 = vunpack.c.l.b16 %v386
  %v489 = vunpack.c.h.b16 %v386
  %v490 = vunpack.c.l.b16 %v387
  %v491 = vunpack.c.h.b16 %v387
  %v492 = vunpack.c.l.b16 %v388
  %v493 = vunpack.c.h.b16 %v388
  %v494 = vunpack.c.l.b16 %v389
  %v495 = vunpack.c.h.b16 %v389
  %v496 = vunpack.c.l.b16 %v390
  %v497 = vunpack.c.h.b16 %v390
  %v498 = vunpack.c.l.b16 %v391
  %v499 = vunpack.c.h.b16 %v391
  %v500 = vpack.c.b16 %v438, %v436
  %v501 = vpack.c.b16 %v439, %v437
  %v502 = vpack.c.b16 %v442, %v440
  %v503 = vpack.c.b16 %v443, %v441
  %v504 = vpack.c.b16 %v446, %v444
  %v505 = vpack.c.b16 %v447, %v445
  %v506 = vpack.c.b16 %v450, %v448
  %v507 = vpack.c.b16 %v451, %v449
  %v508 = vpack.c.b16 %v454, %v452
  %v509 = vpack.c.b16 %v455, %v453
  %v510 = vpack.c.b16 %v458, %v456
  %v511 = vpack.c.b16 %v459, %v457
  %v512 = vpack.c.b16 %v462, %v460
  %v513 = vpack.c.b16 %v463, %v461
  %v514 = vpack.c.b16 %v466, %v464
  %v515 = vpack.c.b16 %v467, %v465
  %v516 = vpack.c.b16 %v470, %v468
  %v517 = vpack.c.b16 %v471, %v469
  %v518 = vpack.c.b16 %v474, %v472
  %v519 = vpack.c.b16 %v475, %v473
  %v520 = vpack.c.b16 %v478, %v476
  %v521 = vpack.c.b16 %v479, %v477
  %v522 = vpack.c.b16 %v482, %v480
  %v523 = vpack.c.b16 %v483, %v481
  %v524 = vpack.c.b16 %v486, %v484
  %v525 = vpack.c.b16 %v487, %v485
  %v526 = vpack.c.b16 %v490, %v488
  %v527 = vpack.c.b16 %v491, %v489
  %v528 = vpack.c.b16 %v494, %v492
  %v529 = vpack.c.b16 %v495, %v493
  %v530 = vpack.c.b16 %v498, %v496
  %v531 = vpack.c.b16 %v499, %v497
  %564 = vmatprep.subr.bf16.mxu0 %v501
  %565 = vmatpush1.bf16.msra.mxu0 %v500
  %566 = vmatprep.subr.bf16.mxu0 %v503
  %567 = vmatpush1.bf16.msra.mxu0 %v502
  %568 = vmatprep.subr.bf16.mxu0 %v505
  %569 = vmatpush1.bf16.msra.mxu0 %v504
  %570 = vmatprep.subr.bf16.mxu0 %v507
  %571 = vmatpush1.bf16.msra.mxu0 %v506
  %572 = vmatprep.subr.bf16.mxu0 %v509
  %573 = vmatpush1.bf16.msra.mxu0 %v508
  %574 = vmatprep.subr.bf16.mxu0 %v511
  %575 = vmatpush1.bf16.msra.mxu0 %v510
  %576 = vmatprep.subr.bf16.mxu0 %v513
  %577 = vmatpush1.bf16.msra.mxu0 %v512
  %578 = vmatprep.subr.bf16.mxu0 %v515
  %579 = vmatpush1.bf16.msra.mxu0 %v514
  %580 = vmatprep.subr.bf16.mxu0 %v517
  %581 = vmatpush1.bf16.msra.mxu0 %v516
  %582 = vmatprep.subr.bf16.mxu0 %v519
  %583 = vmatpush1.bf16.msra.mxu0 %v518
  %584 = vmatprep.subr.bf16.mxu0 %v521
  %585 = vmatpush1.bf16.msra.mxu0 %v520
  %586 = vmatprep.subr.bf16.mxu0 %v523
  %587 = vmatpush1.bf16.msra.mxu0 %v522
  %588 = vmatprep.subr.bf16.mxu0 %v525
  %589 = vmatpush1.bf16.msra.mxu0 %v524
  %590 = vmatprep.subr.bf16.mxu0 %v527
  %591 = vmatpush1.bf16.msra.mxu0 %v526
  %592 = vmatprep.subr.bf16.mxu0 %v529
  %593 = vmatpush1.bf16.msra.mxu0 %v528
  %594 = vmatprep.subr.bf16.mxu0 %v531
  %595 = vmatpush1.bf16.msra.mxu0 %v530
  %596 = vmatprep.mubr.bf16.mxu0 %v345
  %597 = vmatmul.mubr.bf16.gmra.mrb[0].mxu0 %v344
  %v598 = vpop.f32.mrb[0].mxu0
  %v599 = vadd.f32 %v397, %v598
  %v600 = vpop.f32.mrb[0].mxu0
  %v601 = vadd.f32 %v401, %v600
  %v602 = vpop.f32.mrb[0].mxu0
  %v603 = vadd.f32 %v397, %v602
  %v604 = vpop.f32.mrb[0].mxu0
  %v605 = vadd.f32 %v401, %v604
  %606 = vmatprep.mubr.bf16.mxu0 %v347
  %607 = vmatmul.mubr.bf16.gmra.mrb[0].mxu0 %v346
  %v608 = vpop.f32.mrb[0].mxu0
  %v609 = vadd.f32 %v397, %v608
  %v610 = vpop.f32.mrb[0].mxu0
  %v611 = vadd.f32 %v401, %v610
  %v612 = vpop.f32.mrb[0].mxu0
  %v613 = vadd.f32 %v397, %v612
  %v614 = vpop.f32.mrb[0].mxu0
  %v615 = vadd.f32 %v401, %v614
  %616 = vmatprep.mubr.bf16.mxu0 %v349
  %617 = vmatmul.mubr.bf16.gmra.mrb[0].mxu0 %v348
  %v618 = vpop.f32.mrb[0].mxu0
  %v619 = vadd.f32 %v397, %v618
  %v620 = vpop.f32.mrb[0].mxu0
  %v621 = vadd.f32 %v401, %v620
  %v622 = vpop.f32.mrb[0].mxu0
  %v623 = vadd.f32 %v397, %v622
  %v624 = vpop.f32.mrb[0].mxu0
  %v625 = vadd.f32 %v401, %v624
  %626 = vmatprep.mubr.bf16.mxu0 %v351
  %627 = vmatmul.mubr.bf16.gmra.mrb[0].mxu0 %v350
  %v628 = vpop.f32.mrb[0].mxu0
  %v629 = vadd.f32 %v397, %v628
  %v630 = vpop.f32.mrb[0].mxu0
  %v631 = vadd.f32 %v401, %v630
  %v632 = vpop.f32.mrb[0].mxu0
  %v633 = vadd.f32 %v397, %v632
  %v634 = vpop.f32.mrb[0].mxu0
  %v635 = vadd.f32 %v401, %v634
  %636 = vmatprep.mubr.bf16.mxu0 %v353
  %637 = vmatmul.mubr.bf16.gmra.mrb[0].mxu0 %v352
  %v638 = vpop.f32.mrb[0].mxu0
  %v639 = vadd.f32 %v397, %v638
  %v640 = vpop.f32.mrb[0].mxu0
  %v641 = vadd.f32 %v401, %v640
  %v642 = vpop.f32.mrb[0].mxu0
  %v643 = vadd.f32 %v397, %v642
  %v644 = vpop.f32.mrb[0].mxu0
  %v645 = vadd.f32 %v401, %v644
  %646 = vmatprep.mubr.bf16.mxu0 %v355
  %647 = vmatmul.mubr.bf16.gmra.mrb[0].mxu0 %v354
  %v648 = vpop.f32.mrb[0].mxu0
  %v649 = vadd.f32 %v397, %v648
  %v650 = vpop.f32.mrb[0].mxu0
  %v651 = vadd.f32 %v401, %v650
  %v652 = vpop.f32.mrb[0].mxu0
  %v653 = vadd.f32 %v397, %v652
  %v654 = vpop.f32.mrb[0].mxu0
  %v655 = vadd.f32 %v401, %v654
  %656 = vmatprep.mubr.bf16.mxu0 %v357
  %657 = vmatmul.mubr.bf16.gmra.mrb[0].mxu0 %v356
  %v658 = vpop.f32.mrb[0].mxu0
  %v659 = vadd.f32 %v397, %v658
  %v660 = vpop.f32.mrb[0].mxu0
  %v661 = vadd.f32 %v401, %v660
  %v662 = vpop.f32.mrb[0].mxu0
  %v663 = vadd.f32 %v397, %v662
  %v664 = vpop.f32.mrb[0].mxu0
  %v665 = vadd.f32 %v401, %v664
  %666 = vmatprep.mubr.bf16.mxu0 %v359
  %667 = vmatmul.mubr.bf16.gmra.mrb[0].mxu0 %v358
  %v668 = vpop.f32.mrb[0].mxu0
  %v669 = vadd.f32 %v397, %v668
  %v670 = vpop.f32.mrb[0].mxu0
  %v671 = vadd.f32 %v401, %v670
  %v672 = vpop.f32.mrb[0].mxu0
  %v673 = vadd.f32 %v397, %v672
  %v674 = vpop.f32.mrb[0].mxu0
  %v675 = vadd.f32 %v401, %v674
  %676 = vdwg.mxu0
  %v677 = vmax.f32 %v599, 0.0
  %v678 = vmax.f32 %v601, 0.0
  %v679 = vmax.f32 %v603, 0.0
  %v680 = vmax.f32 %v605, 0.0
  %v681 = vmax.f32 %v609, 0.0
  %v682 = vmax.f32 %v611, 0.0
  %v683 = vmax.f32 %v613, 0.0
  %v684 = vmax.f32 %v615, 0.0
  %v685 = vmax.f32 %v619, 0.0
  %v686 = vmax.f32 %v621, 0.0
  %v687 = vmax.f32 %v623, 0.0
  %v688 = vmax.f32 %v625, 0.0
  %v689 = vmax.f32 %v629, 0.0
  %v690 = vmax.f32 %v631, 0.0
  %v691 = vmax.f32 %v633, 0.0
  %v692 = vmax.f32 %v635, 0.0
  %v693 = vmax.f32 %v639, 0.0
  %v694 = vmax.f32 %v641, 0.0
  %v695 = vmax.f32 %v643, 0.0
  %v696 = vmax.f32 %v645, 0.0
  %v697 = vmax.f32 %v649, 0.0
  %v698 = vmax.f32 %v651, 0.0
  %v699 = vmax.f32 %v653, 0.0
  %v700 = vmax.f32 %v655, 0.0
  %v701 = vmax.f32 %v659, 0.0
  %v702 = vmax.f32 %v661, 0.0
  %v703 = vmax.f32 %v663, 0.0
  %v704 = vmax.f32 %v665, 0.0
  %v705 = vmax.f32 %v669, 0.0
  %v706 = vmax.f32 %v671, 0.0
  %v707 = vmax.f32 %v673, 0.0
  %v708 = vmax.f32 %v675, 0.0
  %v709 = vpack.c.bf16 %v679, %v677
  %v710 = vpack.c.bf16 %v680, %v678
  %v711 = vpack.c.bf16 %v683, %v681
  %v712 = vpack.c.bf16 %v684, %v682
  %v713 = vpack.c.bf16 %v687, %v685
  %v714 = vpack.c.bf16 %v688, %v686
  %v715 = vpack.c.bf16 %v691, %v689
  %v716 = vpack.c.bf16 %v692, %v690
  %v717 = vpack.c.bf16 %v695, %v693
  %v718 = vpack.c.bf16 %v696, %v694
  %v719 = vpack.c.bf16 %v699, %v697
  %v720 = vpack.c.bf16 %v700, %v698
  %v721 = vpack.c.bf16 %v703, %v701
  %v722 = vpack.c.bf16 %v704, %v702
  %v723 = vpack.c.bf16 %v707, %v705
  %v724 = vpack.c.bf16 %v708, %v706
  %v725 = vld [vmem:[%s5] sm:$0xff]
  %v726 = vld [vmem:[%s5 + $0x8] sm:$0xff]
  %v727 = vld [vmem:[%s5 + $0x10] sm:$0xff]
  %v728 = vld [vmem:[%s5 + $0x18] sm:$0xff]
  %v729 = vld [vmem:[%s5 + $0x20] sm:$0xff]
  %v730 = vld [vmem:[%s5 + $0x28] sm:$0xff]
  %v731 = vld [vmem:[%s5 + $0x30] sm:$0xff]
  %v732 = vld [vmem:[%s5 + $0x38] sm:$0xff]
  %v733 = vld [vmem:[%s5 + $0x40] sm:$0xff]
  %v734 = vld [vmem:[%s5 + $0x48] sm:$0xff]
  %v735 = vld [vmem:[%s5 + $0x50] sm:$0xff]
  %v736 = vld [vmem:[%s5 + $0x58] sm:$0xff]
  %v737 = vld [vmem:[%s5 + $0x60] sm:$0xff]
  %v738 = vld [vmem:[%s5 + $0x68] sm:$0xff]
  %v739 = vld [vmem:[%s5 + $0x70] sm:$0xff]
  %v740 = vld [vmem:[%s5 + $0x78] sm:$0xff]
  %v741 = vld [vmem:[%s5 + $0x80] sm:$0xff]
  %v742 = vld [vmem:[%s5 + $0x88] sm:$0xff]
  %v743 = vld [vmem:[%s5 + $0x90] sm:$0xff]
  %v744 = vld [vmem:[%s5 + $0x98] sm:$0xff]
  %v745 = vld [vmem:[%s5 + $0xa0] sm:$0xff]
  %v746 = vld [vmem:[%s5 + $0xa8] sm:$0xff]
  %v747 = vld [vmem:[%s5 + $0xb0] sm:$0xff]
  %v748 = vld [vmem:[%s5 + $0xb8] sm:$0xff]
  %v749 = vld [vmem:[%s5 + $0xc0] sm:$0xff]
  %v750 = vld [vmem:[%s5 + $0xc8] sm:$0xff]
  %v751 = vld [vmem:[%s5 + $0xd0] sm:$0xff]
  %v752 = vld [vmem:[%s5 + $0xd8] sm:$0xff]
  %v753 = vld [vmem:[%s5 + $0xe0] sm:$0xff]
  %v754 = vld [vmem:[%s5 + $0xe8] sm:$0xff]
  %v755 = vld [vmem:[%s5 + $0xf0] sm:$0xff]
  %v756 = vld [vmem:[%s5 + $0xf8] sm:$0xff]
  %v757 = vld [vmem:[%s6] sm:$0x3]
  %v759 = vlaneseq
  %v760 = vshrl.u32 %v759, 7
  %v761 = vsub.s32 0, %v760
  %v762 = vrot.slane %v757, %v761
  %v763 = vlaneseq
  %v764 = vshrl.u32 %v763, 7
  %v765 = vsub.s32 1, %v764
  %v766 = vrot.slane %v757, %v765
  %v801 = vunpack.c.l.b16 %v725
  %v802 = vunpack.c.h.b16 %v725
  %v803 = vunpack.c.l.b16 %v726
  %v804 = vunpack.c.h.b16 %v726
  %v805 = vunpack.c.l.b16 %v727
  %v806 = vunpack.c.h.b16 %v727
  %v807 = vunpack.c.l.b16 %v728
  %v808 = vunpack.c.h.b16 %v728
  %v809 = vunpack.c.l.b16 %v729
  %v810 = vunpack.c.h.b16 %v729
  %v811 = vunpack.c.l.b16 %v730
  %v812 = vunpack.c.h.b16 %v730
  %v813 = vunpack.c.l.b16 %v731
  %v814 = vunpack.c.h.b16 %v731
  %v815 = vunpack.c.l.b16 %v732
  %v816 = vunpack.c.h.b16 %v732
  %v817 = vunpack.c.l.b16 %v733
  %v818 = vunpack.c.h.b16 %v733
  %v819 = vunpack.c.l.b16 %v734
  %v820 = vunpack.c.h.b16 %v734
  %v821 = vunpack.c.l.b16 %v735
  %v822 = vunpack.c.h.b16 %v735
  %v823 = vunpack.c.l.b16 %v736
  %v824 = vunpack.c.h.b16 %v736
  %v825 = vunpack.c.l.b16 %v737
  %v826 = vunpack.c.h.b16 %v737
  %v827 = vunpack.c.l.b16 %v738
  %v828 = vunpack.c.h.b16 %v738
  %v829 = vunpack.c.l.b16 %v739
  %v830 = vunpack.c.h.b16 %v739
  %v831 = vunpack.c.l.b16 %v740
  %v832 = vunpack.c.h.b16 %v740
  %v833 = vunpack.c.l.b16 %v741
  %v834 = vunpack.c.h.b16 %v741
  %v835 = vunpack.c.l.b16 %v742
  %v836 = vunpack.c.h.b16 %v742
  %v837 = vunpack.c.l.b16 %v743
  %v838 = vunpack.c.h.b16 %v743
  %v839 = vunpack.c.l.b16 %v744
  %v840 = vunpack.c.h.b16 %v744
  %v841 = vunpack.c.l.b16 %v745
  %v842 = vunpack.c.h.b16 %v745
  %v843 = vunpack.c.l.b16 %v746
  %v844 = vunpack.c.h.b16 %v746
  %v845 = vunpack.c.l.b16 %v747
  %v846 = vunpack.c.h.b16 %v747
  %v847 = vunpack.c.l.b16 %v748
  %v848 = vunpack.c.h.b16 %v748
  %v849 = vunpack.c.l.b16 %v749
  %v850 = vunpack.c.h.b16 %v749
  %v851 = vunpack.c.l.b16 %v750
  %v852 = vunpack.c.h.b16 %v750
  %v853 = vunpack.c.l.b16 %v751
  %v854 = vunpack.c.h.b16 %v751
  %v855 = vunpack.c.l.b16 %v752
  %v856 = vunpack.c.h.b16 %v752
  %v857 = vunpack.c.l.b16 %v753
  %v858 = vunpack.c.h.b16 %v753
  %v859 = vunpack.c.l.b16 %v754
  %v860 = vunpack.c.h.b16 %v754
  %v861 = vunpack.c.l.b16 %v755
  %v862 = vunpack.c.h.b16 %v755
  %v863 = vunpack.c.l.b16 %v756
  %v864 = vunpack.c.h.b16 %v756
  %v865 = vpack.c.b16 %v803, %v801
  %v866 = vpack.c.b16 %v804, %v802
  %v867 = vpack.c.b16 %v807, %v805
  %v868 = vpack.c.b16 %v808, %v806
  %v869 = vpack.c.b16 %v811, %v809
  %v870 = vpack.c.b16 %v812, %v810
  %v871 = vpack.c.b16 %v815, %v813
  %v872 = vpack.c.b16 %v816, %v814
  %v873 = vpack.c.b16 %v819, %v817
  %v874 = vpack.c.b16 %v820, %v818
  %v875 = vpack.c.b16 %v823, %v821
  %v876 = vpack.c.b16 %v824, %v822
  %v877 = vpack.c.b16 %v827, %v825
  %v878 = vpack.c.b16 %v828, %v826
  %v879 = vpack.c.b16 %v831, %v829
  %v880 = vpack.c.b16 %v832, %v830
  %v881 = vpack.c.b16 %v835, %v833
  %v882 = vpack.c.b16 %v836, %v834
  %v883 = vpack.c.b16 %v839, %v837
  %v884 = vpack.c.b16 %v840, %v838
  %v885 = vpack.c.b16 %v843, %v841
  %v886 = vpack.c.b16 %v844, %v842
  %v887 = vpack.c.b16 %v847, %v845
  %v888 = vpack.c.b16 %v848, %v846
  %v889 = vpack.c.b16 %v851, %v849
  %v890 = vpack.c.b16 %v852, %v850
  %v891 = vpack.c.b16 %v855, %v853
  %v892 = vpack.c.b16 %v856, %v854
  %v893 = vpack.c.b16 %v859, %v857
  %v894 = vpack.c.b16 %v860, %v858
  %v895 = vpack.c.b16 %v863, %v861
  %v896 = vpack.c.b16 %v864, %v862
  %929 = vmatprep.subr.bf16.mxu0 %v866
  %930 = vmatpush1.bf16.msra.mxu0 %v865
  %931 = vmatprep.subr.bf16.mxu0 %v868
  %932 = vmatpush1.bf16.msra.mxu0 %v867
  %933 = vmatprep.subr.bf16.mxu0 %v870
  %934 = vmatpush1.bf16.msra.mxu0 %v869
  %935 = vmatprep.subr.bf16.mxu0 %v872
  %936 = vmatpush1.bf16.msra.mxu0 %v871
  %937 = vmatprep.subr.bf16.mxu0 %v874
  %938 = vmatpush1.bf16.msra.mxu0 %v873
  %939 = vmatprep.subr.bf16.mxu0 %v876
  %940 = vmatpush1.bf16.msra.mxu0 %v875
  %941 = vmatprep.subr.bf16.mxu0 %v878
  %942 = vmatpush1.bf16.msra.mxu0 %v877
  %943 = vmatprep.subr.bf16.mxu0 %v880
  %944 = vmatpush1.bf16.msra.mxu0 %v879
  %945 = vmatprep.subr.bf16.mxu0 %v882
  %946 = vmatpush1.bf16.msra.mxu0 %v881
  %947 = vmatprep.subr.bf16.mxu0 %v884
  %948 = vmatpush1.bf16.msra.mxu0 %v883
  %949 = vmatprep.subr.bf16.mxu0 %v886
  %950 = vmatpush1.bf16.msra.mxu0 %v885
  %951 = vmatprep.subr.bf16.mxu0 %v888
  %952 = vmatpush1.bf16.msra.mxu0 %v887
  %953 = vmatprep.subr.bf16.mxu0 %v890
  %954 = vmatpush1.bf16.msra.mxu0 %v889
  %955 = vmatprep.subr.bf16.mxu0 %v892
  %956 = vmatpush1.bf16.msra.mxu0 %v891
  %957 = vmatprep.subr.bf16.mxu0 %v894
  %958 = vmatpush1.bf16.msra.mxu0 %v893
  %959 = vmatprep.subr.bf16.mxu0 %v896
  %960 = vmatpush1.bf16.msra.mxu0 %v895
  %961 = vmatprep.mubr.bf16.mxu0 %v710
  %962 = vmatmul.mubr.bf16.gmra.mrb[0].mxu0 %v709
  %v963 = vpop.f32.mrb[0].mxu0
  %v964 = vadd.f32 %v762, %v963
  %v965 = vpop.f32.mrb[0].mxu0
  %v966 = vadd.f32 %v766, %v965
  %v967 = vpop.f32.mrb[0].mxu0
  %v968 = vadd.f32 %v762, %v967
  %v969 = vpop.f32.mrb[0].mxu0
  %v970 = vadd.f32 %v766, %v969
  %971 = vmatprep.mubr.bf16.mxu0 %v712
  %972 = vmatmul.mubr.bf16.gmra.mrb[0].mxu0 %v711
  %v973 = vpop.f32.mrb[0].mxu0
  %v974 = vadd.f32 %v762, %v973
  %v975 = vpop.f32.mrb[0].mxu0
  %v976 = vadd.f32 %v766, %v975
  %v977 = vpop.f32.mrb[0].mxu0
  %v978 = vadd.f32 %v762, %v977
  %v979 = vpop.f32.mrb[0].mxu0
  %v980 = vadd.f32 %v766, %v979
  %981 = vmatprep.mubr.bf16.mxu0 %v714
  %982 = vmatmul.mubr.bf16.gmra.mrb[0].mxu0 %v713
  %v983 = vpop.f32.mrb[0].mxu0
  %v984 = vadd.f32 %v762, %v983
  %v985 = vpop.f32.mrb[0].mxu0
  %v986 = vadd.f32 %v766, %v985
  %v987 = vpop.f32.mrb[0].mxu0
  %v988 = vadd.f32 %v762, %v987
  %v989 = vpop.f32.mrb[0].mxu0
  %v990 = vadd.f32 %v766, %v989
  %991 = vmatprep.mubr.bf16.mxu0 %v716
  %992 = vmatmul.mubr.bf16.gmra.mrb[0].mxu0 %v715
  %v993 = vpop.f32.mrb[0].mxu0
  %v994 = vadd.f32 %v762, %v993
  %v995 = vpop.f32.mrb[0].mxu0
  %v996 = vadd.f32 %v766, %v995
  %v997 = vpop.f32.mrb[0].mxu0
  %v998 = vadd.f32 %v762, %v997
  %v999 = vpop.f32.mrb[0].mxu0
  %v1000 = vadd.f32 %v766, %v999
  %1001 = vmatprep.mubr.bf16.mxu0 %v718
  %1002 = vmatmul.mubr.bf16.gmra.mrb[0].mxu0 %v717
  %v1003 = vpop.f32.mrb[0].mxu0
  %v1004 = vadd.f32 %v762, %v1003
  %v1005 = vpop.f32.mrb[0].mxu0
  %v1006 = vadd.f32 %v766, %v1005
  %v1007 = vpop.f32.mrb[0].mxu0
  %v1008 = vadd.f32 %v762, %v1007
  %v1009 = vpop.f32.mrb[0].mxu0
  %v1010 = vadd.f32 %v766, %v1009
  %1011 = vmatprep.mubr.bf16.mxu0 %v720
  %1012 = vmatmul.mubr.bf16.gmra.mrb[0].mxu0 %v719
  %v1013 = vpop.f32.mrb[0].mxu0
  %v1014 = vadd.f32 %v762, %v1013
  %v1015 = vpop.f32.mrb[0].mxu0
  %v1016 = vadd.f32 %v766, %v1015
  %v1017 = vpop.f32.mrb[0].mxu0
  %v1018 = vadd.f32 %v762, %v1017
  %v1019 = vpop.f32.mrb[0].mxu0
  %v1020 = vadd.f32 %v766, %v1019
  %1021 = vmatprep.mubr.bf16.mxu0 %v722
  %1022 = vmatmul.mubr.bf16.gmra.mrb[0].mxu0 %v721
  %v1023 = vpop.f32.mrb[0].mxu0
  %v1024 = vadd.f32 %v762, %v1023
  %v1025 = vpop.f32.mrb[0].mxu0
  %v1026 = vadd.f32 %v766, %v1025
  %v1027 = vpop.f32.mrb[0].mxu0
  %v1028 = vadd.f32 %v762, %v1027
  %v1029 = vpop.f32.mrb[0].mxu0
  %v1030 = vadd.f32 %v766, %v1029
  %1031 = vmatprep.mubr.bf16.mxu0 %v724
  %1032 = vmatmul.mubr.bf16.gmra.mrb[0].mxu0 %v723
  %v1033 = vpop.f32.mrb[0].mxu0
  %v1034 = vadd.f32 %v762, %v1033
  %v1035 = vpop.f32.mrb[0].mxu0
  %v1036 = vadd.f32 %v766, %v1035
  %v1037 = vpop.f32.mrb[0].mxu0
  %v1038 = vadd.f32 %v762, %v1037
  %v1039 = vpop.f32.mrb[0].mxu0
  %v1040 = vadd.f32 %v766, %v1039
  %1041 = vdwg.mxu0
  %v1042 = vlaneseq
  %v1043 = vand.u32 %v1042, 127
  %v1044 = vadd.s32 %v1043, 128
  %vm1045 = vcmp.ge.s32.totalorder %v1043, 128
  %vm1046 = vcmp.ge.s32.totalorder %v1044, 128
  %v1047 = vmul.f32 %v964, 1.442695
  %v1048 = vpow.pop %v1047
  %v1049 = vmul.f32 %v966, 1.442695
  %v1050 = vpow.pop %v1049
  %v1051 = vmul.f32 %v968, 1.442695
  %v1052 = vpow.pop %v1051
  %v1053 = vmul.f32 %v970, 1.442695
  %v1054 = vpow.pop %v1053
  %v1055 = vmul.f32 %v974, 1.442695
  %v1056 = vpow.pop %v1055
  %v1057 = vmul.f32 %v976, 1.442695
  %v1058 = vpow.pop %v1057
  %v1059 = vmul.f32 %v978, 1.442695
  %v1060 = vpow.pop %v1059
  %v1061 = vmul.f32 %v980, 1.442695
  %v1062 = vpow.pop %v1061
  %v1063 = vmul.f32 %v984, 1.442695
  %v1064 = vpow.pop %v1063
  %v1065 = vmul.f32 %v986, 1.442695
  %v1066 = vpow.pop %v1065
  %v1067 = vmul.f32 %v988, 1.442695
  %v1068 = vpow.pop %v1067
  %v1069 = vmul.f32 %v990, 1.442695
  %v1070 = vpow.pop %v1069
  %v1071 = vmul.f32 %v994, 1.442695
  %v1072 = vpow.pop %v1071
  %v1073 = vmul.f32 %v996, 1.442695
  %v1074 = vpow.pop %v1073
  %v1075 = vmul.f32 %v998, 1.442695
  %v1076 = vpow.pop %v1075
  %v1077 = vmul.f32 %v1000, 1.442695
  %v1078 = vpow.pop %v1077
  %v1079 = vmul.f32 %v1004, 1.442695
  %v1080 = vpow.pop %v1079
  %v1081 = vmul.f32 %v1006, 1.442695
  %v1082 = vpow.pop %v1081
  %v1083 = vmul.f32 %v1008, 1.442695
  %v1084 = vpow.pop %v1083
  %v1085 = vmul.f32 %v1010, 1.442695
  %v1086 = vpow.pop %v1085
  %v1087 = vmul.f32 %v1014, 1.442695
  %v1088 = vpow.pop %v1087
  %v1089 = vmul.f32 %v1016, 1.442695
  %v1090 = vpow.pop %v1089
  %v1091 = vmul.f32 %v1018, 1.442695
  %v1092 = vpow.pop %v1091
  %v1093 = vmul.f32 %v1020, 1.442695
  %v1094 = vpow.pop %v1093
  %v1095 = vmul.f32 %v1024, 1.442695
  %v1096 = vpow.pop %v1095
  %v1097 = vmul.f32 %v1026, 1.442695
  %v1098 = vpow.pop %v1097
  %v1099 = vmul.f32 %v1028, 1.442695
  %v1100 = vpow.pop %v1099
  %v1101 = vmul.f32 %v1030, 1.442695
  %v1102 = vpow.pop %v1101
  %v1103 = vmul.f32 %v1034, 1.442695
  %v1104 = vpow.pop %v1103
  %v1105 = vmul.f32 %v1036, 1.442695
  %v1106 = vpow.pop %v1105
  %v1107 = vmul.f32 %v1038, 1.442695
  %v1108 = vpow.pop %v1107
  %v1109 = vmul.f32 %v1040, 1.442695
  %v1110 = vpow.pop %v1109
  %v1111 = vsel %vm1045, %v1048, %v964
  %v1112 = vsel %vm1046, %v1050, %v966
  %v1113 = vsel %vm1045, %v1052, %v968
  %v1114 = vsel %vm1046, %v1054, %v970
  %v1115 = vsel %vm1045, %v1056, %v974
  %v1116 = vsel %vm1046, %v1058, %v976
  %v1117 = vsel %vm1045, %v1060, %v978
  %v1118 = vsel %vm1046, %v1062, %v980
  %v1119 = vsel %vm1045, %v1064, %v984
  %v1120 = vsel %vm1046, %v1066, %v986
  %v1121 = vsel %vm1045, %v1068, %v988
  %v1122 = vsel %vm1046, %v1070, %v990
  %v1123 = vsel %vm1045, %v1072, %v994
  %v1124 = vsel %vm1046, %v1074, %v996
  %v1125 = vsel %vm1045, %v1076, %v998
  %v1126 = vsel %vm1046, %v1078, %v1000
  %v1127 = vsel %vm1045, %v1080, %v1004
  %v1128 = vsel %vm1046, %v1082, %v1006
  %v1129 = vsel %vm1045, %v1084, %v1008
  %v1130 = vsel %vm1046, %v1086, %v1010
  %v1131 = vsel %vm1045, %v1088, %v1014
  %v1132 = vsel %vm1046, %v1090, %v1016
  %v1133 = vsel %vm1045, %v1092, %v1018
  %v1134 = vsel %vm1046, %v1094, %v1020
  %v1135 = vsel %vm1045, %v1096, %v1024
  %v1136 = vsel %vm1046, %v1098, %v1026
  %v1137 = vsel %vm1045, %v1100, %v1028
  %v1138 = vsel %vm1046, %v1102, %v1030
  %v1139 = vsel %vm1045, %v1104, %v1034
  %v1140 = vsel %vm1046, %v1106, %v1036
  %v1141 = vsel %vm1045, %v1108, %v1038
  %v1142 = vsel %vm1046, %v1110, %v1040
  %1143 = vst [vmem:[%s7] sm:$0xff] %v1111
  %1144 = vst [vmem:[%s7 + $0x8] sm:$0xff] %v1112
  %1145 = vst [vmem:[%s7 + $0x10] sm:$0xff] %v1113
  %1146 = vst [vmem:[%s7 + $0x18] sm:$0xff] %v1114
  %1147 = vst [vmem:[%s7 + $0x20] sm:$0xff] %v1115
  %1148 = vst [vmem:[%s7 + $0x28] sm:$0xff] %v1116
  %1149 = vst [vmem:[%s7 + $0x30] sm:$0xff] %v1117
  %1150 = vst [vmem:[%s7 + $0x38] sm:$0xff] %v1118
  %1151 = vst [vmem:[%s7 + $0x40] sm:$0xff] %v1119
  %1152 = vst [vmem:[%s7 + $0x48] sm:$0xff] %v1120
  %1153 = vst [vmem:[%s7 + $0x50] sm:$0xff] %v1121
  %1154 = vst [vmem:[%s7 + $0x58] sm:$0xff] %v1122
  %1155 = vst [vmem:[%s7 + $0x60] sm:$0xff] %v1123
  %1156 = vst [vmem:[%s7 + $0x68] sm:$0xff] %v1124
  %1157 = vst [vmem:[%s7 + $0x70] sm:$0xff] %v1125
  %1158 = vst [vmem:[%s7 + $0x78] sm:$0xff] %v1126
  %1159 = vst [vmem:[%s7 + $0x80] sm:$0xff] %v1127
  %1160 = vst [vmem:[%s7 + $0x88] sm:$0xff] %v1128
  %1161 = vst [vmem:[%s7 + $0x90] sm:$0xff] %v1129
  %1162 = vst [vmem:[%s7 + $0x98] sm:$0xff] %v1130
  %1163 = vst [vmem:[%s7 + $0xa0] sm:$0xff] %v1131
  %1164 = vst [vmem:[%s7 + $0xa8] sm:$0xff] %v1132
  %1165 = vst [vmem:[%s7 + $0xb0] sm:$0xff] %v1133
  %1166 = vst [vmem:[%s7 + $0xb8] sm:$0xff] %v1134
  %1167 = vst [vmem:[%s7 + $0xc0] sm:$0xff] %v1135
  %1168 = vst [vmem:[%s7 + $0xc8] sm:$0xff] %v1136
  %1169 = vst [vmem:[%s7 + $0xd0] sm:$0xff] %v1137
  %1170 = vst [vmem:[%s7 + $0xd8] sm:$0xff] %v1138
  %1171 = vst [vmem:[%s7 + $0xe0] sm:$0xff] %v1139
  %1172 = vst [vmem:[%s7 + $0xe8] sm:$0xff] %v1140
  %1173 = vst [vmem:[%s7 + $0xf0] sm:$0xff] %v1141
  %1174 = vst [vmem:[%s7 + $0xf8] sm:$0xff] %v1142
  // Predicated region
  $region30: #{actor_forward.1} parent=0 // pred_check
    _
  $region31: #{actor_forward.1} parent=0 // pred_check_branch
    %1176 = sbr.rel (0) target = $region33
  $region32: #{actor_forward.1} parent=0 // pred_region
    _
  $region33: #{actor_forward.1} parent=0 // pred_fallthru
    _
  // Predicated region
  $region34: #{actor_forward.1} parent=0 // pred_check
    _
  $region35: #{actor_forward.1} parent=0 // pred_check_branch
    %1178 = sbr.rel (0) target = $region37
  $region36: #{actor_forward.1} parent=0 // pred_region
    _
  $region37: #{actor_forward.1} parent=0 // pred_fallthru
    _

</llo_original>
